<compile_context>
chip_gen: v6e
topology: v6e:2x2x1
jax: 0.10.0
libtpu: 0.0.40
codegen_flags: <defaults>
</compile_context>

<pallas_src>
import functools
from typing import NamedTuple, Optional

import jax
import jax.numpy as jnp
import numpy as np
from jax.experimental import pallas as pl
from jax.experimental.pallas import tpu as pltpu


# ----------------------------- hardware config -------------------------------
class HWConfig(NamedTuple):
    pipe_budget: int        # bytes allowed for all pipelined (double-buffered) tiles
    vmem_limit: int         # scoped VMEM limit handed to Mosaic
    target_tile_bytes: int  # target bytes of x per grid step (step-overhead amortization)
    num_tc: int             # TensorCores per chip (2 on v7x)


def _detect_hw() -> HWConfig:
    # Conservative defaults: correct and ~roofline on v5e / v6e (and safe anywhere).
    cfg = HWConfig(pipe_budget=24 << 20, vmem_limit=32 << 20,
                   target_tile_bytes=2 << 20, num_tc=1)
    try:
        kind = jax.devices()[0].device_kind.lower()
    except Exception:  # detection must never break the kernel
        kind = ""
    if ("v7" in kind) or ("7x" in kind):
        # v7x: ~3.2 TB/s HBM, 64 MiB VMEM, 2 TensorCores -> bigger steps, more VMEM,
        # and make sure the grid has >= 2 programs so both cores get work.
        cfg = HWConfig(pipe_budget=40 << 20, vmem_limit=48 << 20,
                       target_tile_bytes=4 << 20, num_tc=2)
    return cfg


_HW = _detect_hw()


# ----------------------------- Pallas kernel -------------------------------
def add_pe_kernel(x_ref, pe_ref, o_ref):
    # dropout(p=0.0) is the identity, so the forward is a pure (broadcast) add.
    # Accumulate in f32 (parity with the PyTorch reference, whose pe buffer is
    # f32); for f32 activations the casts are no-ops. pe_ref may be (1, ts, D)
    # against x_ref (B, ts, D) -> jnp broadcasting handles it.
    o_ref[...] = (x_ref[...].astype(jnp.float32)
                  + pe_ref[...].astype(jnp.float32)).astype(o_ref.dtype)
    # TODO(synk): for dropout p > 0 in training mode, draw the keep-mask in-kernel
    # with pltpu.prng_seed(seed ^ program_id) + pltpu.stateful_bernoulli.


# ----------------------------- tile selection -------------------------------
def _round_up(v: int, m: int) -> int:
    return ((v + m - 1) // m) * m


def _round_down(v: int, m: int) -> int:
    return max(m, (v // m) * m)


def _sublane(itemsize: int) -> int:
    # f32 -> 8 rows, bf16 -> 16, int8/fp8 -> 32 (sub-32-bit dtypes pack along sublanes).
    return max(8, 32 // max(1, itemsize))


def _choose_seq_tile(S: int, bytes_per_row_x: int, bytes_per_row_all: int,
                     sublane: int, cfg: HWConfig) -> int:
    """Sequence-tile rows: big enough to amortize the ~0.35us/step overhead
    (target cfg.target_tile_bytes of x per step), small enough that all
    double-buffered tiles fit cfg.pipe_budget. Rounded DOWN to the sublane
    multiple so the budget is never exceeded."""
    if S <= sublane:
        return S  # full extent: legal block even when not 8-aligned
    rows_target = max(sublane, cfg.target_tile_bytes // max(1, bytes_per_row_x))
    rows_budget = max(sublane, cfg.pipe_budget // max(1, bytes_per_row_all))
    ts = min(rows_target, rows_budget, S)
    return _round_down(ts, sublane)


# --------------------------- lane-dense 3-D path ----------------------------
def _forward_3d(x: jax.Array, pe: jax.Array, cfg: HWConfig) -> jax.Array:
    """D % 128 == 0."""
    B, S, D = x.shape
    x_item = x.dtype.itemsize
    pe_item = pe.dtype.itemsize
    sub = _sublane(x_item)

    # Preferred: 1-D grid over sequence tiles, whole batch per step.
    # Pipelined VMEM per sequence row: x + out double-buffered (4*B*D*x_item)
    # plus pe double-buffered (2*D*pe_item).
    wb_row_all = 4 * B * D * x_item + 2 * D * pe_item
    wb_row_x = B * D * x_item

    if wb_row_all * sub <= cfg.pipe_budget:
        ts = _choose_seq_tile(S, wb_row_x, wb_row_all, sub, cfg)
        # v7x: guarantee both TensorCores get grid work when S allows a split.
        if cfg.num_tc > 1 and pl.cdiv(S, ts) < cfg.num_tc and S > sub:
            ts = min(ts, _round_up(pl.cdiv(S, cfg.num_tc), sub))
        grid_s = pl.cdiv(S, ts)
        return pl.pallas_call(
            add_pe_kernel,
            out_shape=jax.ShapeDtypeStruct((B, S, D), x.dtype),
            grid_spec=pltpu.PrefetchScalarGridSpec(
                num_scalar_prefetch=0,
                grid=(grid_s,),
                in_specs=[
                    pl.BlockSpec((B, ts, D), lambda s: (0, s, 0)),   # x (full batch)
                    pl.BlockSpec((1, ts, D), lambda s: (0, s, 0)),   # pe (broadcast)
                ],
                out_specs=pl.BlockSpec((B, ts, D), lambda s: (0, s, 0)),
            ),
            input_output_aliases={0: 0},  # in-place when the caller donates x
            compiler_params=pltpu.CompilerParams(
                dimension_semantics=("parallel",),
                vmem_limit_bytes=cfg.vmem_limit,
            ),
        )(x, pe)

    # Large-batch fallback: grid (seq_tile, batch), batch innermost so the pe
    # tile's block index is unchanged across the batch loop -> stays VMEM-resident
    # (no re-DMA). Both axes "parallel" so v7x can shard across its 2 cores.
    row_all = 4 * D * x_item + 2 * D * pe_item
    ts = _choose_seq_tile(S, D * x_item, row_all, sub, cfg)
    grid_s = pl.cdiv(S, ts)
    return pl.pallas_call(
        add_pe_kernel,
        out_shape=jax.ShapeDtypeStruct((B, S, D), x.dtype),
        grid_spec=pltpu.PrefetchScalarGridSpec(
            num_scalar_prefetch=0,
            grid=(grid_s, B),
            in_specs=[
                pl.BlockSpec((pl.Squeezed(), ts, D), lambda s, b: (b, s, 0)),  # x
                pl.BlockSpec((pl.Squeezed(), ts, D), lambda s, b: (0, s, 0)),  # pe
            ],
            out_specs=pl.BlockSpec((pl.Squeezed(), ts, D), lambda s, b: (b, s, 0)),
        ),
        input_output_aliases={0: 0},
        compiler_params=pltpu.CompilerParams(
            dimension_semantics=("parallel", "parallel"),
            vmem_limit_bytes=cfg.vmem_limit,
        ),
    )(x, pe)


# ------------------------ small-D lane-dense flat path ----------------------
def _forward_flat(x: jax.Array, pe: jax.Array, cfg: HWConfig) -> jax.Array:
    """D % 128 != 0: flatten (S, D) -> lane-dense L so stores are full-width vst."""
    B, S, D = x.shape
    L = S * D
    x_item = x.dtype.itemsize
    pe_item = pe.dtype.itemsize

    # Slice only the live pe rows; the reshapes live in the same jit as the
    # pallas_call, so they are cheap layout plumbing, not extra HBM passes.
    x_flat = x.reshape(B, L)
    pe_flat = pe[:, :S, :].reshape(1, L)

    if L <= 128:
        tl = L  # equal to the full dim -> legal block
    else:
        bytes_per_col = 4 * B * x_item + 2 * pe_item     # x,out double-buffered + pe
        cols_budget = max(128, cfg.pipe_budget // bytes_per_col)
        cols_target = max(128, cfg.target_tile_bytes // max(1, B * x_item))
        tl = _round_down(min(L, cols_budget, cols_target), 128)
    grid_t = pl.cdiv(L, tl)

    out_flat = pl.pallas_call(
        add_pe_kernel,
        out_shape=jax.ShapeDtypeStruct((B, L), x.dtype),
        grid_spec=pltpu.PrefetchScalarGridSpec(
            num_scalar_prefetch=0,
            grid=(grid_t,),
            in_specs=[
                pl.BlockSpec((B, tl), lambda t: (0, t)),   # x  (full batch per tile)
                pl.BlockSpec((1, tl), lambda t: (0, t)),   # pe (broadcast in-kernel)
            ],
            out_specs=pl.BlockSpec((B, tl), lambda t: (0, t)),
        ),
        input_output_aliases={0: 0},
        compiler_params=pltpu.CompilerParams(
            dimension_semantics=("parallel",),
            vmem_limit_bytes=cfg.vmem_limit,
        ),
    )(x_flat, pe_flat)
    return out_flat.reshape(B, S, D)


# --------------------------------- wrapper ----------------------------------
def positional_encoding_forward(x: jax.Array, pe: jax.Array,
                                *, cfg: Optional[HWConfig] = None) -> jax.Array:
    """x: (B, S, D); pe: (1, max_len, D).  Returns x + pe[:, :S, :] (dropout p=0).

    pe is read in its stored dtype and up-cast in-kernel (no full-table astype
    pass per call).  The output aliases x, so callers that donate x
    (jax.jit(..., donate_argnums=0)) update it in place with no extra (B,S,D)
    HBM allocation; non-donating callers just pay one defensive copy.
    """
    cfg = _HW if cfg is None else cfg
    B, S, D = x.shape
    if S > pe.shape[1]:
        raise ValueError(f"sequence length {S} exceeds pe max_len {pe.shape[1]}")
    if D % 128 == 0:
        return _forward_3d(x, pe, cfg)
    return _forward_flat(x, pe, cfg)


# --------------------------- parameter construction -------------------------
def make_sinusoidal_pe(d_model: int, max_len: int) -> jax.Array:
    """Deterministic sinusoidal PE table, shape (1, max_len, d_model)."""
    position = np.arange(max_len, dtype=np.float32)[:, None]               # (L, 1)
    div_term = np.exp(
        np.arange(0, d_model, 2, dtype=np.float32) * (-np.log(10000.0) / d_model)
    )                                                                       # (D/2,)
    pe = np.zeros((max_len, d_model), dtype=np.float32)
    pe[:, 0::2] = np.sin(position * div_term)
    pe[:, 1::2] = np.cos(position * div_term)
    return jnp.asarray(pe)[None, :, :]                                      # (1, L, D)


# ----------------------------------- main ------------------------------------
if __name__ == "__main__":
    max_len = 601
    key = jax.random.PRNGKey(0)
    k1, k2, k3 = jax.random.split(key, 3)

    fwd = jax.jit(positional_encoding_forward)

    # Case 1: module's small test shape (D=32 -> lane-dense flattened path).
    B, S, D = 2, 8, 32
    x = jax.random.normal(k1, (B, S, D), dtype=jnp.float32)
    pe = make_sinusoidal_pe(D, max_len)
    ref = np.asarray(x) + np.asarray(pe[:, :S, :])
    out = jax.block_until_ready(fwd(x, pe))
    np.testing.assert_allclose(np.asarray(out), ref, rtol=1e-6, atol=1e-6)

    # Case 2: lane-dense d_model (D=128 -> whole-batch 3-D path, 1-D sequence grid).
    B2, S2, D2 = 2, 16, 128
    x2 = jax.random.normal(k2, (B2, S2, D2), dtype=jnp.float32)
    pe2 = make_sinusoidal_pe(D2, max_len)
    ref2 = np.asarray(x2) + np.asarray(pe2[:, :S2, :])
    out2 = jax.block_until_ready(fwd(x2, pe2))
    np.testing.assert_allclose(np.asarray(out2), ref2, rtol=1e-6, atol=1e-6)

    # Case 3: force the large-batch fallback (grid=(seq_tile, batch), squeezed batch
    # dim, pe resident across the inner batch loop) by shrinking the pipe budget.
    B3, S3, D3 = 4, 32, 128
    x3 = jax.random.normal(k3, (B3, S3, D3), dtype=jnp.float32)
    pe3 = make_sinusoidal_pe(D3, max_len)
    tiny_cfg = HWConfig(pipe_budget=64 * 1024, vmem_limit=_HW.vmem_limit,
                        target_tile_bytes=_HW.target_tile_bytes, num_tc=_HW.num_tc)
    fwd_2d = jax.jit(functools.partial(positional_encoding_forward, cfg=tiny_cfg))
    ref3 = np.asarray(x3) + np.asarray(pe3[:, :S3, :])
    out3 = jax.block_until_ready(fwd_2d(x3, pe3))
    np.testing.assert_allclose(np.asarray(out3), ref3, rtol=1e-6, atol=1e-6)

    print("KERNEL_OK")
</pallas_src>

<mosaic_0001>
module attributes {stable_mosaic.version = 11 : i64} {
  func.func @add_pe_kernel(%arg0: i32, %arg1: memref<2x256xf32, #tpu.memory_space<vmem>>, %arg2: memref<1x256xf32, #tpu.memory_space<vmem>>, %arg3: memref<2x256xf32, #tpu.memory_space<vmem>>) attributes {dimension_semantics = [#tpu.dimension_semantics<parallel>], iteration_bounds = array<i64: 1>, scalar_prefetch = 0 : i64, scratch_operands = 0 : i64, tpu.core_type = #tpu.core_type<tc>, window_params = [{transform_indices = @transform_0, window_bounds = array<i64: 2, 256>}, {transform_indices = @transform_1, window_bounds = array<i64: 1, 256>}, {transform_indices = @transform_2, window_bounds = array<i64: 2, 256>}]} {
    %c0 = arith.constant 0 : index
    %c0_0 = arith.constant 0 : index
    %0 = vector.load %arg1[%c0, %c0_0] : memref<2x256xf32, #tpu.memory_space<vmem>>, vector<2x256xf32>
    %c0_1 = arith.constant 0 : index
    %c0_2 = arith.constant 0 : index
    %1 = vector.load %arg2[%c0_1, %c0_2] : memref<1x256xf32, #tpu.memory_space<vmem>>, vector<1x256xf32>
    %2 = vector.broadcast %1 : vector<1x256xf32> to vector<2x256xf32>
    %3 = arith.addf %0, %2 : vector<2x256xf32>
    %c0_3 = arith.constant 0 : index
    %c0_4 = arith.constant 0 : index
    %4 = vector.load %arg3[%c0_3, %c0_4] : memref<2x256xf32, #tpu.memory_space<vmem>>, vector<2x256xf32>
    tpu.vector_store %arg3[%c0_3, %c0_4], %3 {strides = array<i32>} : memref<2x256xf32, #tpu.memory_space<vmem>>, vector<2x256xf32>,
    return
  }
  func.func @transform_0(%arg0: i32) -> (i32, i32) {
    %c0_i32 = arith.constant 0 : i32
    %c0_i32_0 = arith.constant 0 : i32
    return %c0_i32, %arg0 : i32, i32
  }
  func.func @transform_1(%arg0: i32) -> (i32, i32) {
    %c0_i32 = arith.constant 0 : i32
    %c0_i32_0 = arith.constant 0 : i32
    return %c0_i32, %arg0 : i32, i32
  }
  func.func @transform_2(%arg0: i32) -> (i32, i32) {
    %c0_i32 = arith.constant 0 : i32
    %c0_i32_0 = arith.constant 0 : i32
    return %c0_i32, %arg0 : i32, i32
  }
}

</mosaic_0001>

<llo_original>
// kernel: positional_encoding_forward.1
$region0: #{positional_encoding_forward.1}
  #allocation0 [shape = 'u32[]', space=smem, size = 0x4, offset = 0x4, fixed_abs, tag = 'smem constant byte address 0x4 - core index']
  #allocation1 [shape = 'u32[144,128]{1,0:T(1,128)}', space=vmem, size = 0x12000, scoped, tag = 'internal scratch']
  %s0 = inlined_call_operand.vmem [shape: f32[2,256], index: 0, kind: input, shape index: {}, may-alias: {0,2}]
  %s1 = inlined_call_operand.vmem [shape: f32[1,256], index: 1, kind: input, shape index: {}]
  %s2 = inlined_call_operand.vmem [shape: f32[2,256], index: 2, kind: output, shape index: {}, may-alias: {0,2}]
  %s3 = sld [smem:[#allocation0]]
  $region18: #{positional_encoding_forward.1} parent=0
    _
  %s5 = ssub.s32 1, %s3
  %s6 = scalar_select 0, %s5, %s3
  // Predicated region
  $region2: #{positional_encoding_forward.1} parent=0 // pred_check
    _
  $region3: #{positional_encoding_forward.1} parent=0 // pred_check_branch
    %8 = sbr.rel (0) target = $region5
  $region4: #{positional_encoding_forward.1} parent=0 // pred_region
    _
  $region5: #{positional_encoding_forward.1} parent=0 // pred_fallthru
    _
  // Predicated region
  $region6: #{positional_encoding_forward.1} parent=0 // pred_check
    _
  $region7: #{positional_encoding_forward.1} parent=0 // pred_check_branch
    %10 = sbr.rel (0) target = $region9
  $region8: #{positional_encoding_forward.1} parent=0 // pred_region
    _
  $region9: #{positional_encoding_forward.1} parent=0 // pred_fallthru
    _
  %v11 = vld [vmem:[%s0] sm:$0xf]
  %v12 = vld [vmem:[%s1] sm:$0x3]
  %v14 = vlaneseq
  %v15 = vshrl.u32 %v14, 7
  %v16 = vsub.s32 0, %v15
  %v17 = vrot.slane %v12, %v16
  %v18 = vlaneseq
  %v19 = vshrl.u32 %v18, 7
  %v20 = vsub.s32 1, %v19
  %v21 = vrot.slane %v12, %v20
  %v22 = vcombine.low %v17, %v21
  %v24 = vunpack.c.l.s4 1983009808
  %v25 = vunpack.c.0.s8 %v24
  %v26 = vlaneseq
  %v27 = vshrl.u32 %v26, 7
  %v28 = vsub.s32 %v25, %v27
  %v29 = vrot.slane %v22, %v28
  %v31 = vadd.f32 %v11, %v29
  %32 = vst [vmem:[%s2] sm:$0xf] %v31
  // Predicated region
  $region10: #{positional_encoding_forward.1} parent=0 // pred_check
    _
  $region11: #{positional_encoding_forward.1} parent=0 // pred_check_branch
    %34 = sbr.rel (0) target = $region13
  $region12: #{positional_encoding_forward.1} parent=0 // pred_region
    _
  $region13: #{positional_encoding_forward.1} parent=0 // pred_fallthru
    _
  // Predicated region
  $region14: #{positional_encoding_forward.1} parent=0 // pred_check
    _
  $region15: #{positional_encoding_forward.1} parent=0 // pred_check_branch
    %36 = sbr.rel (0) target = $region17
  $region16: #{positional_encoding_forward.1} parent=0 // pred_region
    _
  $region17: #{positional_encoding_forward.1} parent=0 // pred_fallthru
    _

</llo_original>
